<compile_context>
chip_gen: v6e
topology: v6e:2x2x1
jax: 0.10.0
libtpu: 0.0.40
codegen_flags: <defaults>
</compile_context>

<pallas_src>
import numpy as np
import jax
import jax.numpy as jnp
from jax.experimental import pallas as pl
from jax.experimental.pallas import tpu as pltpu

PAD = 128   # lane-dense padded feature width for every layer
TB = 128    # batch rows per grid step


# -----------------------------------------------------------------------------
# Pallas kernel: (fc+conv1) -> sigmoid -> conv2 -> sigmoid -> conv3 -> sigmoid
#                -> conv4 -> tanh      (all layers are dense 128x128 operators)
# -----------------------------------------------------------------------------
def bob_kernel(x_ref, a_ref, b_ref, o_ref):
    bias = b_ref[...]                       # (4, PAD) f32, tiny (1 vreg)
    h = x_ref[...]                          # (TB, PAD) bf16, +/-1 inputs exact
    # layers 0..2: matmul (bf16 MXU, f32 acc) + bias + sigmoid (f32 VPU/EUP)
    for layer in range(3):
        z = jnp.dot(h, a_ref[layer],
                    preferred_element_type=jnp.float32) + bias[layer]
        h = jax.nn.sigmoid(z).astype(jnp.bfloat16)
    # final layer: matmul + bias + tanh, written lane-dense in f32
    z = jnp.dot(h, a_ref[3], preferred_element_type=jnp.float32) + bias[3]
    o_ref[...] = jnp.tanh(z)


# -----------------------------------------------------------------------------
# Deterministic parameter init (mirrors PyTorch default U(-1/sqrt(fan_in), ..))
# -----------------------------------------------------------------------------
def init_params(rng, cipher_bits, key_bits):
    D = cipher_bits + key_bits
    ks = jax.random.split(rng, 10)

    def u(k, shape, fan_in):
        bound = 1.0 / np.sqrt(fan_in)
        return jax.random.uniform(k, shape, jnp.float32, -bound, bound)

    return dict(
        Wfc=u(ks[0], (D, D), D), bfc=u(ks[1], (D,), D),            # nn.Linear(D, D)
        w1=u(ks[2], (2, 1, 4), 4), b1=u(ks[3], (2,), 4),           # Conv1d(1,2,4,1,1)
        w2=u(ks[4], (4, 2, 2), 4), b2=u(ks[5], (4,), 4),           # Conv1d(2,4,2,2,1)
        w3=u(ks[6], (4, 4, 1), 4), b3=u(ks[7], (4,), 4),           # Conv1d(4,4,1,1,0)
        w4=u(ks[8], (1, 4, 1), 4), b4=u(ks[9], (1,), 4),           # Conv1d(4,1,1,1,0)
    )


# -----------------------------------------------------------------------------
# Build padded, packed dense operators from the fc/conv weights.
# feature flattening convention: index = out_channel * L_out + position
# -----------------------------------------------------------------------------
def build_operators(params, cipher_bits, key_bits, plain_bits, pad=PAD):
    D = cipher_bits + key_bits           # input_size
    L1 = D + 2 - 4 + 1                   # conv1 out length = D - 1
    N = (L1 + 2 - 2) // 2 + 1            # conv2 out length (== output_size)
    assert N == plain_bits, (N, plain_bits)
    assert max(D, 2 * L1, 4 * N) <= pad

    Wfc = np.asarray(params["Wfc"], np.float32)
    bfc = np.asarray(params["bfc"], np.float32)
    w1 = np.asarray(params["w1"]); b1 = np.asarray(params["b1"])
    w2 = np.asarray(params["w2"]); b2 = np.asarray(params["b2"])
    w3 = np.asarray(params["w3"]); b3 = np.asarray(params["b3"])
    w4 = np.asarray(params["w4"]); b4 = np.asarray(params["b4"])

    # conv1: y[oc, t] = b1[oc] + sum_j w1[oc,0,j] * x[t + j - 1]
    A1 = np.zeros((D, 2 * L1), np.float32)
    for oc in range(2):
        for t in range(L1):
            for j in range(4):
                i = t + j - 1
                if 0 <= i < D:
                    A1[i, oc * L1 + t] += w1[oc, 0, j]
    B1 = np.repeat(b1, L1).astype(np.float32)

    # fc fused into conv1 (no nonlinearity between them):
    #   (x @ Wfc^T + bfc) @ A1 + B1  ==  x @ (Wfc^T @ A1) + (bfc @ A1 + B1)
    A01 = Wfc.T @ A1                     # (D, 2*L1)
    B01 = bfc @ A1 + B1                  # (2*L1,)

    # conv2 (stride 2, pad 1): y[oc,t] = b2[oc] + sum_ic sum_j w2[oc,ic,j]*h[ic, 2t+j-1]
    A2 = np.zeros((2 * L1, 4 * N), np.float32)
    for oc in range(4):
        for ic in range(2):
            for t in range(N):
                for j in range(2):
                    s = 2 * t + j - 1
                    if 0 <= s < L1:
                        A2[ic * L1 + s, oc * N + t] += w2[oc, ic, j]
    B2 = np.repeat(b2, N).astype(np.float32)

    # conv3 (1x1): pointwise channel mix
    A3 = np.zeros((4 * N, 4 * N), np.float32)
    for oc in range(4):
        for ic in range(4):
            A3[ic * N:(ic + 1) * N, oc * N:(oc + 1) * N] = np.eye(N) * w3[oc, ic, 0]
    B3 = np.repeat(b3, N).astype(np.float32)

    # conv4 (1x1, 4 -> 1 channel)
    A4 = np.zeros((4 * N, N), np.float32)
    for ic in range(4):
        A4[ic * N:(ic + 1) * N, :] = np.eye(N) * w4[0, ic, 0]
    B4 = np.full((N,), b4[0], np.float32)

    # zero-pad every operator/bias to (pad, pad)/(pad,) and pack into one slab.
    # zero rows beyond each layer's true input width guarantee the padded
    # (garbage) lanes of the previous activation contribute nothing.
    def padmat(a):
        out = np.zeros((pad, pad), np.float32)
        out[:a.shape[0], :a.shape[1]] = a
        return out

    def padvec(v):
        out = np.zeros((pad,), np.float32)
        out[:v.shape[0]] = v
        return out

    A_pack = np.stack([padmat(A01), padmat(A2), padmat(A3), padmat(A4)])  # (4,pad,pad)
    B_pack = np.stack([padvec(B01), padvec(B2), padvec(B3), padvec(B4)])  # (4,pad)

    return dict(
        A=jnp.asarray(A_pack, jnp.bfloat16),   # bf16 MXU operands
        B=jnp.asarray(B_pack, jnp.float32),    # f32 bias / activation math
        out_size=N,
        in_size=D,
    )


# -----------------------------------------------------------------------------
# Wrapper (concat + pad + slice are glue; all compute lives in the kernel)
# -----------------------------------------------------------------------------
def bob_forward(c, k, ops, batch_block=TB):
    x = jnp.concatenate([c, k], axis=-1).astype(jnp.bfloat16)
    B, D = x.shape
    pad = ops["A"].shape[-1]
    B_pad = ((B + batch_block - 1) // batch_block) * batch_block
    x = jnp.pad(x, ((0, B_pad - B), (0, pad - D)))   # lane- & sublane-dense input

    out = pl.pallas_call(
        bob_kernel,
        out_shape=jax.ShapeDtypeStruct((B_pad, pad), jnp.float32),
        grid_spec=pltpu.PrefetchScalarGridSpec(
            num_scalar_prefetch=0,
            grid=(B_pad // batch_block,),
            in_specs=[
                pl.BlockSpec((batch_block, pad), lambda i: (i, 0)),     # x tiles
                pl.BlockSpec((4, pad, pad), lambda i: (0, 0, 0)),       # weights, resident
                pl.BlockSpec((4, pad), lambda i: (0, 0)),               # biases, resident
            ],
            out_specs=pl.BlockSpec((batch_block, pad), lambda i: (i, 0)),
        ),
        compiler_params=pltpu.CompilerParams(
            dimension_semantics=("parallel",)),   # megacore sharding on v7x
    )(x, ops["A"], ops["B"])

    return out[:B, :ops["out_size"]]


# -----------------------------------------------------------------------------
# Pure-JAX reference of the PyTorch forward (for validation only)
# -----------------------------------------------------------------------------
def bob_reference(c, k, params, plain_bits):
    x = jnp.concatenate([c, k], axis=-1).astype(jnp.float32)
    x = x @ params["Wfc"].T + params["bfc"]
    x = x[:, None, :]  # NCL

    def conv1d(x, w, b, stride, pad):
        y = jax.lax.conv_general_dilated(
            x, w, window_strides=(stride,), padding=[(pad, pad)],
            dimension_numbers=("NCH", "OIH", "NCH"))
        return y + b[None, :, None]

    x = jax.nn.sigmoid(conv1d(x, params["w1"], params["b1"], 1, 1))
    x = jax.nn.sigmoid(conv1d(x, params["w2"], params["b2"], 2, 1))
    x = jax.nn.sigmoid(conv1d(x, params["w3"], params["b3"], 1, 0))
    x = jnp.tanh(conv1d(x, params["w4"], params["b4"], 1, 0))
    return x.reshape(-1, plain_bits)


if __name__ == "__main__":
    CIPHER, KEY, PLAIN, BATCH = 16, 16, 16, 2  # input_size = 32, output_size = 16

    root = jax.random.PRNGKey(0)
    k_param, k_c, k_k = jax.random.split(root, 3)

    params = init_params(k_param, CIPHER, KEY)
    ops = build_operators(params, CIPHER, KEY, PLAIN)

    # "bit" inputs in {-1, +1}, as in the nncrypt setup (exact in bf16)
    c = jnp.sign(jax.random.normal(k_c, (BATCH, CIPHER), jnp.float32))
    k = jnp.sign(jax.random.normal(k_k, (BATCH, KEY), jnp.float32))

    out = jax.block_until_ready(bob_forward(c, k, ops))
    ref = jax.block_until_ready(bob_reference(c, k, params, PLAIN))

    assert out.shape == (BATCH, PLAIN), out.shape
    # bf16 MXU operands (f32 accumulation) introduce <~1e-2 deviation vs the
    # pure-f32 reference; tolerance widened accordingly.
    assert np.allclose(np.asarray(out), np.asarray(ref), atol=2e-2, rtol=0.0), (
        np.max(np.abs(np.asarray(out) - np.asarray(ref))))

    print("KERNEL_OK")
</pallas_src>

<mosaic_0001>
module attributes {stable_mosaic.version = 11 : i64} {
  func.func @bob_kernel(%arg0: i32, %arg1: memref<128x128xbf16, #tpu.memory_space<vmem>>, %arg2: memref<4x128x128xbf16, #tpu.memory_space<vmem>>, %arg3: memref<4x128xf32, #tpu.memory_space<vmem>>, %arg4: memref<128x128xf32, #tpu.memory_space<vmem>>) attributes {dimension_semantics = [#tpu.dimension_semantics<parallel>], iteration_bounds = array<i64: 1>, scalar_prefetch = 0 : i64, scratch_operands = 0 : i64, tpu.core_type = #tpu.core_type<tc>, window_params = [{transform_indices = @transform_0, window_bounds = array<i64: 128, 128>}, {pipeline_mode = #tpu.pipeline_mode<synchronous>, transform_indices = @transform_1, window_bounds = array<i64: 4, 128, 128>}, {pipeline_mode = #tpu.pipeline_mode<synchronous>, transform_indices = @transform_2, window_bounds = array<i64: 4, 128>}, {transform_indices = @transform_3, window_bounds = array<i64: 128, 128>}]} {
    %c0 = arith.constant 0 : index
    %c0_0 = arith.constant 0 : index
    %0 = vector.load %arg3[%c0, %c0_0] : memref<4x128xf32, #tpu.memory_space<vmem>>, vector<4x128xf32>
    %c0_1 = arith.constant 0 : index
    %c0_2 = arith.constant 0 : index
    %1 = vector.load %arg1[%c0_1, %c0_2] : memref<128x128xbf16, #tpu.memory_space<vmem>>, vector<128x128xbf16>
    %c0_3 = arith.constant 0 : index
    %c0_4 = arith.constant 0 : index
    %c0_5 = arith.constant 0 : index
    %2 = vector.load %arg2[%c0_3, %c0_4, %c0_5] : memref<4x128x128xbf16, #tpu.memory_space<vmem>>, vector<1x128x128xbf16>
    %3 = vector.shape_cast %2 : vector<1x128x128xbf16> to vector<128x128xbf16>
    %cst = arith.constant dense<0.000000e+00> : vector<128x128xf32>
    %4 = tpu.matmul %1, %3, %cst {dimension_numbers = #tpu.dot_dimension_numbers<[1], [0], [0], [1], [0, 0, 1, 1], [], []>} : vector<128x128xbf16>, vector<128x128xbf16>, vector<128x128xf32> -> vector<128x128xf32>
    %5 = vector.extract_strided_slice %0 {offsets = [0, 0], sizes = [1, 128], strides = [1, 1]} : vector<4x128xf32> to vector<1x128xf32>
    %6 = vector.shape_cast %5 : vector<1x128xf32> to vector<128xf32>
    %7 = vector.shape_cast %6 : vector<128xf32> to vector<1x128xf32>
    %8 = vector.broadcast %7 : vector<1x128xf32> to vector<128x128xf32>
    %9 = arith.addf %4, %8 : vector<128x128xf32>
    %10 = arith.negf %9 : vector<128x128xf32>
    %11 = math.exp %10 : vector<128x128xf32>
    %cst_6 = arith.constant 1.000000e+00 : f32
    %12 = vector.broadcast %cst_6 : f32 to vector<128x128xf32>
    %13 = arith.addf %12, %11 : vector<128x128xf32>
    %14 = arith.divf %12, %13 : vector<128x128xf32>
    %15 = arith.truncf %14 : vector<128x128xf32> to vector<128x128xbf16>
    %c1 = arith.constant 1 : index
    %c0_7 = arith.constant 0 : index
    %c0_8 = arith.constant 0 : index
    %16 = vector.load %arg2[%c1, %c0_7, %c0_8] : memref<4x128x128xbf16, #tpu.memory_space<vmem>>, vector<1x128x128xbf16>
    %17 = vector.shape_cast %16 : vector<1x128x128xbf16> to vector<128x128xbf16>
    %cst_9 = arith.constant dense<0.000000e+00> : vector<128x128xf32>
    %18 = tpu.matmul %15, %17, %cst_9 {dimension_numbers = #tpu.dot_dimension_numbers<[1], [0], [0], [1], [0, 0, 1, 1], [], []>} : vector<128x128xbf16>, vector<128x128xbf16>, vector<128x128xf32> -> vector<128x128xf32>
    %19 = vector.extract_strided_slice %0 {offsets = [1, 0], sizes = [1, 128], strides = [1, 1]} : vector<4x128xf32> to vector<1x128xf32>
    %20 = vector.shape_cast %19 : vector<1x128xf32> to vector<128xf32>
    %21 = vector.shape_cast %20 : vector<128xf32> to vector<1x128xf32>
    %22 = vector.broadcast %21 : vector<1x128xf32> to vector<128x128xf32>
    %23 = arith.addf %18, %22 : vector<128x128xf32>
    %24 = arith.negf %23 : vector<128x128xf32>
    %25 = math.exp %24 : vector<128x128xf32>
    %cst_10 = arith.constant 1.000000e+00 : f32
    %26 = vector.broadcast %cst_10 : f32 to vector<128x128xf32>
    %27 = arith.addf %26, %25 : vector<128x128xf32>
    %28 = arith.divf %26, %27 : vector<128x128xf32>
    %29 = arith.truncf %28 : vector<128x128xf32> to vector<128x128xbf16>
    %c2 = arith.constant 2 : index
    %c0_11 = arith.constant 0 : index
    %c0_12 = arith.constant 0 : index
    %30 = vector.load %arg2[%c2, %c0_11, %c0_12] : memref<4x128x128xbf16, #tpu.memory_space<vmem>>, vector<1x128x128xbf16>
    %31 = vector.shape_cast %30 : vector<1x128x128xbf16> to vector<128x128xbf16>
    %cst_13 = arith.constant dense<0.000000e+00> : vector<128x128xf32>
    %32 = tpu.matmul %29, %31, %cst_13 {dimension_numbers = #tpu.dot_dimension_numbers<[1], [0], [0], [1], [0, 0, 1, 1], [], []>} : vector<128x128xbf16>, vector<128x128xbf16>, vector<128x128xf32> -> vector<128x128xf32>
    %33 = vector.extract_strided_slice %0 {offsets = [2, 0], sizes = [1, 128], strides = [1, 1]} : vector<4x128xf32> to vector<1x128xf32>
    %34 = vector.shape_cast %33 : vector<1x128xf32> to vector<128xf32>
    %35 = vector.shape_cast %34 : vector<128xf32> to vector<1x128xf32>
    %36 = vector.broadcast %35 : vector<1x128xf32> to vector<128x128xf32>
    %37 = arith.addf %32, %36 : vector<128x128xf32>
    %38 = arith.negf %37 : vector<128x128xf32>
    %39 = math.exp %38 : vector<128x128xf32>
    %cst_14 = arith.constant 1.000000e+00 : f32
    %40 = vector.broadcast %cst_14 : f32 to vector<128x128xf32>
    %41 = arith.addf %40, %39 : vector<128x128xf32>
    %42 = arith.divf %40, %41 : vector<128x128xf32>
    %43 = arith.truncf %42 : vector<128x128xf32> to vector<128x128xbf16>
    %c3 = arith.constant 3 : index
    %c0_15 = arith.constant 0 : index
    %c0_16 = arith.constant 0 : index
    %44 = vector.load %arg2[%c3, %c0_15, %c0_16] : memref<4x128x128xbf16, #tpu.memory_space<vmem>>, vector<1x128x128xbf16>
    %45 = vector.shape_cast %44 : vector<1x128x128xbf16> to vector<128x128xbf16>
    %cst_17 = arith.constant dense<0.000000e+00> : vector<128x128xf32>
    %46 = tpu.matmul %43, %45, %cst_17 {dimension_numbers = #tpu.dot_dimension_numbers<[1], [0], [0], [1], [0, 0, 1, 1], [], []>} : vector<128x128xbf16>, vector<128x128xbf16>, vector<128x128xf32> -> vector<128x128xf32>
    %47 = vector.extract_strided_slice %0 {offsets = [3, 0], sizes = [1, 128], strides = [1, 1]} : vector<4x128xf32> to vector<1x128xf32>
    %48 = vector.shape_cast %47 : vector<1x128xf32> to vector<128xf32>
    %49 = vector.shape_cast %48 : vector<128xf32> to vector<1x128xf32>
    %50 = vector.broadcast %49 : vector<1x128xf32> to vector<128x128xf32>
    %51 = arith.addf %46, %50 : vector<128x128xf32>
    %52 = math.tanh %51 : vector<128x128xf32>
    %c0_18 = arith.constant 0 : index
    %c0_19 = arith.constant 0 : index
    %53 = vector.load %arg4[%c0_18, %c0_19] : memref<128x128xf32, #tpu.memory_space<vmem>>, vector<128x128xf32>
    tpu.vector_store %arg4[%c0_18, %c0_19], %52 {strides = array<i32>} : memref<128x128xf32, #tpu.memory_space<vmem>>, vector<128x128xf32>,
    return
  }
  func.func @transform_0(%arg0: i32) -> (i32, i32) {
    %c0_i32 = arith.constant 0 : i32
    %c0_i32_0 = arith.constant 0 : i32
    return %arg0, %c0_i32 : i32, i32
  }
  func.func @transform_1(%arg0: i32) -> (i32, i32, i32) {
    %c0_i32 = arith.constant 0 : i32
    %c0_i32_0 = arith.constant 0 : i32
    %c0_i32_1 = arith.constant 0 : i32
    %c0_i32_2 = arith.constant 0 : i32
    return %c0_i32, %c0_i32_0, %c0_i32_1 : i32, i32, i32
  }
  func.func @transform_2(%arg0: i32) -> (i32, i32) {
    %c0_i32 = arith.constant 0 : i32
    %c0_i32_0 = arith.constant 0 : i32
    %c0_i32_1 = arith.constant 0 : i32
    return %c0_i32, %c0_i32_0 : i32, i32
  }
  func.func @transform_3(%arg0: i32) -> (i32, i32) {
    %c0_i32 = arith.constant 0 : i32
    %c0_i32_0 = arith.constant 0 : i32
    return %arg0, %c0_i32 : i32, i32
  }
}

</mosaic_0001>

<llo_original>
// kernel: tpu_custom_call.1
$region0: #{tpu_custom_call.1}
  #allocation0 [shape = 'u32[]', space=smem, size = 0x4, offset = 0x4, fixed_abs, tag = 'smem constant byte address 0x4 - core index']
  #allocation1 [shape = 'u32[144,128]{1,0:T(1,128)}', space=vmem, size = 0x12000, scoped, tag = 'internal scratch']
  %s0 = inlined_call_operand.hbm [shape: bf16[128,128], index: 0, kind: input, shape index: {}]
  %s1 = inlined_call_operand.hbm [shape: bf16[4,128,128], index: 1, kind: input, shape index: {}]
  %s2 = inlined_call_operand.hbm [shape: f32[4,128], index: 2, kind: input, shape index: {}]
  %s3 = inlined_call_operand.hbm [shape: f32[128,128], index: 3, kind: output, shape index: {}]
  %s4 = sld [smem:[#allocation0]]
  $region34: #{tpu_custom_call.1} parent=0
    _
  %s6 = ssub.s32 1, %s4
  %s7 = scalar_select 0, %s6, %s4
  $region1: #{tpu_custom_call.1} parent=0
    #allocation2 [shape = 'u8[32768]{0}', space=vmem, size = 0x8000, scoped, tag = 'input window, operand 0, single buffered']
    #allocation3 [shape = 's32[1]{0}', space=sflag, size = 0x4, scoped, tag = 'scoped memory for tpu_custom_call.1']
    #allocation4 [shape = 's32[1]{0}', space=sflag, size = 0x4, scoped, tag = 'scoped memory for tpu_custom_call.1']
    #allocation5 [shape = 'u8[131072]{0}', space=vmem, size = 0x20000, scoped, tag = 'input window, operand 1, single buffered']
    #allocation6 [shape = 's32[1]{0}', space=sflag, size = 0x4, scoped, tag = 'scoped memory for tpu_custom_call.1']
    #allocation7 [shape = 'u8[2048]{0}', space=vmem, size = 0x800, scoped, tag = 'input window, operand 2, single buffered']
    #allocation8 [shape = 'u8[65536]{0}', space=vmem, size = 0x10000, scoped, tag = 'output window, operand 0, single buffered']
    %8 = vsyncpa [#allocation3], 0
    %9 = vsyncpa [#allocation6], 0
    %10 = vsyncpa [#allocation4], 0
    // Predicated region
    $region2: #{tpu_custom_call.1} parent=1 // pred_check
      _
    $region3: #{tpu_custom_call.1} parent=1 // pred_check_branch
      %12 = sbr.rel (0) target = $region5
    $region4: #{tpu_custom_call.1} parent=1 // pred_region
      %s14 = ssub.s32 1024, 1024
      %15 = vsyncadd [#allocation3], %s14
      %s16 = sshll.u32 [#allocation2], 4
      %s17 = int_to_ptr.vmem [resolvable:$true] %s16
      %22 = dma.hbm_to_vmem [thread:$0]  %s0, 1024, %s17, [#allocation3], 64, 64, 4
    $region5: #{tpu_custom_call.1} parent=1 // pred_fallthru
      _
    // Predicated region
    $region6: #{tpu_custom_call.1} parent=1 // pred_check
      _
    $region7: #{tpu_custom_call.1} parent=1 // pred_check_branch
      %24 = sbr.rel (0) target = $region9
    $region8: #{tpu_custom_call.1} parent=1 // pred_region
      %s26 = ssub.s32 4096, 4096
      %27 = vsyncadd [#allocation6], %s26
      %s28 = sshll.u32 [#allocation5], 4
      %s29 = int_to_ptr.vmem [resolvable:$true] %s28
      %34 = dma.hbm_to_vmem [thread:$0]  %s1, 4096, %s29, [#allocation6], 64, 64, 4
    $region9: #{tpu_custom_call.1} parent=1 // pred_fallthru
      _
    // Predicated region
    $region10: #{tpu_custom_call.1} parent=1 // pred_check
      _
    $region11: #{tpu_custom_call.1} parent=1 // pred_check_branch
      %36 = sbr.rel (0) target = $region13
    $region12: #{tpu_custom_call.1} parent=1 // pred_region
      %s38 = ssub.s32 64, 64
      %39 = vsyncadd [#allocation6], %s38
      %s41 = sshll.u32 [#allocation7], 4
      %s42 = int_to_ptr.vmem [resolvable:$true] %s41
      %44 = dma.hbm_to_vmem [thread:$0]  %s2, 64, %s42, [#allocation6]
    $region13: #{tpu_custom_call.1} parent=1 // pred_fallthru
      _
    // Predicated region
    $region14: #{tpu_custom_call.1} parent=1 // pred_check
      _
    $region15: #{tpu_custom_call.1} parent=1 // pred_check_branch
      %46 = sbr.rel (0) target = $region17
    $region16: #{tpu_custom_call.1} parent=1 // pred_region
      %47 = dma.done [#allocation3], 1024
    $region17: #{tpu_custom_call.1} parent=1 // pred_fallthru
      _
    // Predicated region
    $region18: #{tpu_custom_call.1} parent=1 // pred_check
      _
    $region19: #{tpu_custom_call.1} parent=1 // pred_check_branch
      %49 = sbr.rel (0) target = $region21
    $region20: #{tpu_custom_call.1} parent=1 // pred_region
      %50 = dma.done [#allocation6], 4096
    $region21: #{tpu_custom_call.1} parent=1 // pred_fallthru
      _
    // Predicated region
    $region22: #{tpu_custom_call.1} parent=1 // pred_check
      _
    $region23: #{tpu_custom_call.1} parent=1 // pred_check_branch
      %52 = sbr.rel (0) target = $region25
    $region24: #{tpu_custom_call.1} parent=1 // pred_region
      %53 = dma.done [#allocation6], 64
    $region25: #{tpu_custom_call.1} parent=1 // pred_fallthru
      _
    %v55 = vld [vmem:[#allocation7] sm:$0xf]
    %v56 = vld [vmem:[#allocation2] sm:$0xf]
    %v57 = vld [vmem:[#allocation2 + $0x4] sm:$0xf]
    %v58 = vld [vmem:[#allocation2 + $0x8] sm:$0xf]
    %v59 = vld [vmem:[#allocation2 + $0xc] sm:$0xf]
    %v60 = vld [vmem:[#allocation2 + $0x10] sm:$0xf]
    %v61 = vld [vmem:[#allocation2 + $0x14] sm:$0xf]
    %v62 = vld [vmem:[#allocation2 + $0x18] sm:$0xf]
    %v63 = vld [vmem:[#allocation2 + $0x1c] sm:$0xf]
    %v64 = vld [vmem:[#allocation2 + $0x20] sm:$0xf]
    %v65 = vld [vmem:[#allocation2 + $0x24] sm:$0xf]
    %v66 = vld [vmem:[#allocation2 + $0x28] sm:$0xf]
    %v67 = vld [vmem:[#allocation2 + $0x2c] sm:$0xf]
    %v68 = vld [vmem:[#allocation2 + $0x30] sm:$0xf]
    %v69 = vld [vmem:[#allocation2 + $0x34] sm:$0xf]
    %v70 = vld [vmem:[#allocation2 + $0x38] sm:$0xf]
    %v71 = vld [vmem:[#allocation2 + $0x3c] sm:$0xf]
    %v72 = vld [vmem:[#allocation5] sm:$0xf]
    %v73 = vld [vmem:[#allocation5 + $0x4] sm:$0xf]
    %v74 = vld [vmem:[#allocation5 + $0x8] sm:$0xf]
    %v75 = vld [vmem:[#allocation5 + $0xc] sm:$0xf]
    %v76 = vld [vmem:[#allocation5 + $0x10] sm:$0xf]
    %v77 = vld [vmem:[#allocation5 + $0x14] sm:$0xf]
    %v78 = vld [vmem:[#allocation5 + $0x18] sm:$0xf]
    %v79 = vld [vmem:[#allocation5 + $0x1c] sm:$0xf]
    %v80 = vld [vmem:[#allocation5 + $0x20] sm:$0xf]
    %v81 = vld [vmem:[#allocation5 + $0x24] sm:$0xf]
    %v82 = vld [vmem:[#allocation5 + $0x28] sm:$0xf]
    %v83 = vld [vmem:[#allocation5 + $0x2c] sm:$0xf]
    %v84 = vld [vmem:[#allocation5 + $0x30] sm:$0xf]
    %v85 = vld [vmem:[#allocation5 + $0x34] sm:$0xf]
    %v86 = vld [vmem:[#allocation5 + $0x38] sm:$0xf]
    %v87 = vld [vmem:[#allocation5 + $0x3c] sm:$0xf]
    %v88 = vlaneseq
    %v89 = vshrl.u32 %v88, 7
    %v90 = vsub.s32 0, %v89
    %v91 = vrot.slane %v55, %v90
    %v108 = vunpack.c.l.b16 %v56
    %v109 = vunpack.c.l.b16 %v57
    %v110 = vunpack.c.l.b16 %v58
    %v111 = vunpack.c.l.b16 %v59
    %v112 = vunpack.c.l.b16 %v60
    %v113 = vunpack.c.l.b16 %v61
    %v114 = vunpack.c.l.b16 %v62
    %v115 = vunpack.c.l.b16 %v63
    %v116 = vunpack.c.l.b16 %v64
    %v117 = vunpack.c.l.b16 %v65
    %v118 = vunpack.c.l.b16 %v66
    %v119 = vunpack.c.l.b16 %v67
    %v120 = vunpack.c.l.b16 %v68
    %v121 = vunpack.c.l.b16 %v69
    %v122 = vunpack.c.l.b16 %v70
    %v123 = vunpack.c.l.b16 %v71
    %v124 = vpack.c.b16 %v109, %v108
    %v125 = vpack.c.b16 %v111, %v110
    %v126 = vpack.c.b16 %v113, %v112
    %v127 = vpack.c.b16 %v115, %v114
    %v128 = vpack.c.b16 %v117, %v116
    %v129 = vpack.c.b16 %v119, %v118
    %v130 = vpack.c.b16 %v121, %v120
    %v131 = vpack.c.b16 %v123, %v122
    %v156 = vunpack.c.l.b16 %v72
    %v157 = vunpack.c.l.b16 %v73
    %v158 = vunpack.c.l.b16 %v74
    %v159 = vunpack.c.l.b16 %v75
    %v160 = vunpack.c.l.b16 %v76
    %v161 = vunpack.c.l.b16 %v77
    %v162 = vunpack.c.l.b16 %v78
    %v163 = vunpack.c.l.b16 %v79
    %v164 = vunpack.c.l.b16 %v80
    %v165 = vunpack.c.l.b16 %v81
    %v166 = vunpack.c.l.b16 %v82
    %v167 = vunpack.c.l.b16 %v83
    %v168 = vunpack.c.l.b16 %v84
    %v169 = vunpack.c.l.b16 %v85
    %v170 = vunpack.c.l.b16 %v86
    %v171 = vunpack.c.l.b16 %v87
    %v172 = vpack.c.b16 %v157, %v156
    %v173 = vpack.c.b16 %v159, %v158
    %v174 = vpack.c.b16 %v161, %v160
    %v175 = vpack.c.b16 %v163, %v162
    %v176 = vpack.c.b16 %v165, %v164
    %v177 = vpack.c.b16 %v167, %v166
    %v178 = vpack.c.b16 %v169, %v168
    %v179 = vpack.c.b16 %v171, %v170
    %188 = vmatprep.subr.bf16.mxu0 0
    %189 = vmatpush1.bf16.msra.mxu0 %v179
    %190 = vmatprep.subr.bf16.mxu0 0
    %191 = vmatpush1.bf16.msra.mxu0 %v178
    %192 = vmatprep.subr.bf16.mxu0 0
    %193 = vmatpush1.bf16.msra.mxu0 %v177
    %194 = vmatprep.subr.bf16.mxu0 0
    %195 = vmatpush1.bf16.msra.mxu0 %v176
    %196 = vmatprep.subr.bf16.mxu0 0
    %197 = vmatpush1.bf16.msra.mxu0 %v175
    %198 = vmatprep.subr.bf16.mxu0 0
    %199 = vmatpush1.bf16.msra.mxu0 %v174
    %200 = vmatprep.subr.bf16.mxu0 0
    %201 = vmatpush1.bf16.msra.mxu0 %v173
    %202 = vmatprep.subr.bf16.mxu0 0
    %203 = vmatpush1.bf16.msra.mxu0 %v172
    %204 = vmatprep.subr.bf16.mxu0 0
    %205 = vmatpush2.bf16.msra.mxu0 0
    %206 = vmatprep.subr.bf16.mxu0 0
    %207 = vmatpush2.bf16.msra.mxu0 0
    %208 = vmatprep.subr.bf16.mxu0 0
    %209 = vmatpush2.bf16.msra.mxu0 0
    %210 = vmatprep.subr.bf16.mxu0 0
    %211 = vmatpush2.bf16.msra.mxu0 0
    %212 = vmatprep.subr.bf16.mxu0 0
    %213 = vmatpush2.bf16.msra.mxu0 0
    %214 = vmatprep.subr.bf16.mxu0 0
    %215 = vmatpush2.bf16.msra.mxu0 0
    %216 = vmatprep.subr.bf16.mxu0 0
    %217 = vmatpush2.bf16.msra.mxu0 0
    %218 = vmatprep.subr.bf16.mxu0 0
    %219 = vmatpush2.bf16.msra.mxu0 0
    %220 = vmatprep.mubr.bf16.mxu0 0
    %221 = vmatmul.mubr.bf16.gmra.mxu0 %v124
    %v222 = vpop.f32.mrf.mxu0
    %v223 = vadd.f32 %v91, %v222
    %v224 = vpop.f32.mrf.mxu0
    %v225 = vpop.f32.mrf.mxu0
    %v226 = vadd.f32 %v91, %v225
    %v227 = vpop.f32.mrf.mxu0
    %228 = vmatprep.mubr.bf16.mxu0 0
    %229 = vmatmul.mubr.bf16.gmra.mxu0 %v125
    %v230 = vpop.f32.mrf.mxu0
    %v231 = vadd.f32 %v91, %v230
    %v232 = vpop.f32.mrf.mxu0
    %v233 = vpop.f32.mrf.mxu0
    %v234 = vadd.f32 %v91, %v233
    %v235 = vpop.f32.mrf.mxu0
    %236 = vmatprep.mubr.bf16.mxu0 0
    %237 = vmatmul.mubr.bf16.gmra.mxu0 %v126
    %v238 = vpop.f32.mrf.mxu0
    %v239 = vadd.f32 %v91, %v238
    %v240 = vpop.f32.mrf.mxu0
    %v241 = vpop.f32.mrf.mxu0
    %v242 = vadd.f32 %v91, %v241
    %v243 = vpop.f32.mrf.mxu0
    %244 = vmatprep.mubr.bf16.mxu0 0
    %245 = vmatmul.mubr.bf16.gmra.mxu0 %v127
    %v246 = vpop.f32.mrf.mxu0
    %v247 = vadd.f32 %v91, %v246
    %v248 = vpop.f32.mrf.mxu0
    %v249 = vpop.f32.mrf.mxu0
    %v250 = vadd.f32 %v91, %v249
    %v251 = vpop.f32.mrf.mxu0
    %252 = vmatprep.mubr.bf16.mxu0 0
    %253 = vmatmul.mubr.bf16.gmra.mxu0 %v128
    %v254 = vpop.f32.mrf.mxu0
    %v255 = vadd.f32 %v91, %v254
    %v256 = vpop.f32.mrf.mxu0
    %v257 = vpop.f32.mrf.mxu0
    %v258 = vadd.f32 %v91, %v257
    %v259 = vpop.f32.mrf.mxu0
    %260 = vmatprep.mubr.bf16.mxu0 0
    %261 = vmatmul.mubr.bf16.gmra.mxu0 %v129
    %v262 = vpop.f32.mrf.mxu0
    %v263 = vadd.f32 %v91, %v262
    %v264 = vpop.f32.mrf.mxu0
    %v265 = vpop.f32.mrf.mxu0
    %v266 = vadd.f32 %v91, %v265
    %v267 = vpop.f32.mrf.mxu0
    %268 = vmatprep.mubr.bf16.mxu0 0
    %269 = vmatmul.mubr.bf16.gmra.mxu0 %v130
    %v270 = vpop.f32.mrf.mxu0
    %v271 = vadd.f32 %v91, %v270
    %v272 = vpop.f32.mrf.mxu0
    %v273 = vpop.f32.mrf.mxu0
    %v274 = vadd.f32 %v91, %v273
    %v275 = vpop.f32.mrf.mxu0
    %276 = vmatprep.mubr.bf16.mxu0 0
    %277 = vmatmul.mubr.bf16.gmra.mxu0 %v131
    %v278 = vpop.f32.mrf.mxu0
    %v279 = vadd.f32 %v91, %v278
    %v280 = vpop.f32.mrf.mxu0
    %v281 = vpop.f32.mrf.mxu0
    %v282 = vadd.f32 %v91, %v281
    %v283 = vpop.f32.mrf.mxu0
    %284 = vdwg.mxu0
    %v285 = vxor.u32 %v223, 2147483648
    %v286 = vxor.u32 %v226, 2147483648
    %v287 = vxor.u32 %v231, 2147483648
    %v288 = vxor.u32 %v234, 2147483648
    %v289 = vxor.u32 %v239, 2147483648
    %v290 = vxor.u32 %v242, 2147483648
    %v291 = vxor.u32 %v247, 2147483648
    %v292 = vxor.u32 %v250, 2147483648
    %v293 = vxor.u32 %v255, 2147483648
    %v294 = vxor.u32 %v258, 2147483648
    %v295 = vxor.u32 %v263, 2147483648
    %v296 = vxor.u32 %v266, 2147483648
    %v297 = vxor.u32 %v271, 2147483648
    %v298 = vxor.u32 %v274, 2147483648
    %v299 = vxor.u32 %v279, 2147483648
    %v300 = vxor.u32 %v282, 2147483648
    %v301 = vmul.f32 %v285, 1.442695
    %v302 = vpow.pop %v301
    %v303 = vmul.f32 %v286, 1.442695
    %v304 = vpow.pop %v303
    %v305 = vmul.f32 %v287, 1.442695
    %v306 = vpow.pop %v305
    %v307 = vmul.f32 %v288, 1.442695
    %v308 = vpow.pop %v307
    %v309 = vmul.f32 %v289, 1.442695
    %v310 = vpow.pop %v309
    %v311 = vmul.f32 %v290, 1.442695
    %v312 = vpow.pop %v311
    %v313 = vmul.f32 %v291, 1.442695
    %v314 = vpow.pop %v313
    %v315 = vmul.f32 %v292, 1.442695
    %v316 = vpow.pop %v315
    %v317 = vmul.f32 %v293, 1.442695
    %v318 = vpow.pop %v317
    %v319 = vmul.f32 %v294, 1.442695
    %v320 = vpow.pop %v319
    %v321 = vmul.f32 %v295, 1.442695
    %v322 = vpow.pop %v321
    %v323 = vmul.f32 %v296, 1.442695
    %v324 = vpow.pop %v323
    %v325 = vmul.f32 %v297, 1.442695
    %v326 = vpow.pop %v325
    %v327 = vmul.f32 %v298, 1.442695
    %v328 = vpow.pop %v327
    %v329 = vmul.f32 %v299, 1.442695
    %v330 = vpow.pop %v329
    %v331 = vmul.f32 %v300, 1.442695
    %v332 = vpow.pop %v331
    %v333 = vadd.f32 %v302, 1.0
    %v334 = vadd.f32 %v304, 1.0
    %v335 = vadd.f32 %v306, 1.0
    %v336 = vadd.f32 %v308, 1.0
    %v337 = vadd.f32 %v310, 1.0
    %v338 = vadd.f32 %v312, 1.0
    %v339 = vadd.f32 %v314, 1.0
    %v340 = vadd.f32 %v316, 1.0
    %v341 = vadd.f32 %v318, 1.0
    %v342 = vadd.f32 %v320, 1.0
    %v343 = vadd.f32 %v322, 1.0
    %v344 = vadd.f32 %v324, 1.0
    %v345 = vadd.f32 %v326, 1.0
    %v346 = vadd.f32 %v328, 1.0
    %v347 = vadd.f32 %v330, 1.0
    %v348 = vadd.f32 %v332, 1.0
    %v349 = vrcp.pop %v333
    %v350 = vmul.f32 1.0, %v349
    %v351 = vrcp.pop %v334
    %v352 = vmul.f32 1.0, %v351
    %v353 = vrcp.pop %v335
    %v354 = vmul.f32 1.0, %v353
    %v355 = vrcp.pop %v336
    %v356 = vmul.f32 1.0, %v355
    %v357 = vrcp.pop %v337
    %v358 = vmul.f32 1.0, %v357
    %v359 = vrcp.pop %v338
    %v360 = vmul.f32 1.0, %v359
    %v361 = vrcp.pop %v339
    %v362 = vmul.f32 1.0, %v361
    %v363 = vrcp.pop %v340
    %v364 = vmul.f32 1.0, %v363
    %v365 = vrcp.pop %v341
    %v366 = vmul.f32 1.0, %v365
    %v367 = vrcp.pop %v342
    %v368 = vmul.f32 1.0, %v367
    %v369 = vrcp.pop %v343
    %v370 = vmul.f32 1.0, %v369
    %v371 = vrcp.pop %v344
    %v372 = vmul.f32 1.0, %v371
    %v373 = vrcp.pop %v345
    %v374 = vmul.f32 1.0, %v373
    %v375 = vrcp.pop %v346
    %v376 = vmul.f32 1.0, %v375
    %v377 = vrcp.pop %v347
    %v378 = vmul.f32 1.0, %v377
    %v379 = vrcp.pop %v348
    %v380 = vmul.f32 1.0, %v379
    %v381 = vpack.c.bf16 %v352, %v350
    %v382 = vpack.c.bf16 %v356, %v354
    %v383 = vpack.c.bf16 %v360, %v358
    %v384 = vpack.c.bf16 %v364, %v362
    %v385 = vpack.c.bf16 %v368, %v366
    %v386 = vpack.c.bf16 %v372, %v370
    %v387 = vpack.c.bf16 %v376, %v374
    %v388 = vpack.c.bf16 %v380, %v378
    %s389 = scalar_lea.vmem [#allocation5], 64
    %v390 = vld [vmem:[%s389] sm:$0xf]
    %v391 = vld [vmem:[%s389 + $0x4] sm:$0xf]
    %v392 = vld [vmem:[%s389 + $0x8] sm:$0xf]
    %v393 = vld [vmem:[%s389 + $0xc] sm:$0xf]
    %v394 = vld [vmem:[%s389 + $0x10] sm:$0xf]
    %v395 = vld [vmem:[%s389 + $0x14] sm:$0xf]
    %v396 = vld [vmem:[%s389 + $0x18] sm:$0xf]
    %v397 = vld [vmem:[%s389 + $0x1c] sm:$0xf]
    %v398 = vld [vmem:[%s389 + $0x20] sm:$0xf]
    %v399 = vld [vmem:[%s389 + $0x24] sm:$0xf]
    %v400 = vld [vmem:[%s389 + $0x28] sm:$0xf]
    %v401 = vld [vmem:[%s389 + $0x2c] sm:$0xf]
    %v402 = vld [vmem:[%s389 + $0x30] sm:$0xf]
    %v403 = vld [vmem:[%s389 + $0x34] sm:$0xf]
    %v404 = vld [vmem:[%s389 + $0x38] sm:$0xf]
    %v405 = vld [vmem:[%s389 + $0x3c] sm:$0xf]
    %v406 = vlaneseq
    %v407 = vshrl.u32 %v406, 7
    %v408 = vsub.s32 1, %v407
    %v409 = vrot.slane %v55, %v408
    %v426 = vunpack.c.l.b16 %v390
    %v427 = vunpack.c.l.b16 %v391
    %v428 = vunpack.c.l.b16 %v392
    %v429 = vunpack.c.l.b16 %v393
    %v430 = vunpack.c.l.b16 %v394
    %v431 = vunpack.c.l.b16 %v395
    %v432 = vunpack.c.l.b16 %v396
    %v433 = vunpack.c.l.b16 %v397
    %v434 = vunpack.c.l.b16 %v398
    %v435 = vunpack.c.l.b16 %v399
    %v436 = vunpack.c.l.b16 %v400
    %v437 = vunpack.c.l.b16 %v401
    %v438 = vunpack.c.l.b16 %v402
    %v439 = vunpack.c.l.b16 %v403
    %v440 = vunpack.c.l.b16 %v404
    %v441 = vunpack.c.l.b16 %v405
    %v442 = vpack.c.b16 %v427, %v426
    %v443 = vpack.c.b16 %v429, %v428
    %v444 = vpack.c.b16 %v431, %v430
    %v445 = vpack.c.b16 %v433, %v432
    %v446 = vpack.c.b16 %v435, %v434
    %v447 = vpack.c.b16 %v437, %v436
    %v448 = vpack.c.b16 %v439, %v438
    %v449 = vpack.c.b16 %v441, %v440
    %458 = vmatprep.subr.bf16.mxu0 0
    %459 = vmatpush1.bf16.msra.mxu0 %v449
    %460 = vmatprep.subr.bf16.mxu0 0
    %461 = vmatpush1.bf16.msra.mxu0 %v448
    %462 = vmatprep.subr.bf16.mxu0 0
    %463 = vmatpush1.bf16.msra.mxu0 %v447
    %464 = vmatprep.subr.bf16.mxu0 0
    %465 = vmatpush1.bf16.msra.mxu0 %v446
    %466 = vmatprep.subr.bf16.mxu0 0
    %467 = vmatpush1.bf16.msra.mxu0 %v445
    %468 = vmatprep.subr.bf16.mxu0 0
    %469 = vmatpush1.bf16.msra.mxu0 %v444
    %470 = vmatprep.subr.bf16.mxu0 0
    %471 = vmatpush1.bf16.msra.mxu0 %v443
    %472 = vmatprep.subr.bf16.mxu0 0
    %473 = vmatpush1.bf16.msra.mxu0 %v442
    %474 = vmatprep.subr.bf16.mxu0 0
    %475 = vmatpush2.bf16.msra.mxu0 0
    %476 = vmatprep.subr.bf16.mxu0 0
    %477 = vmatpush2.bf16.msra.mxu0 0
    %478 = vmatprep.subr.bf16.mxu0 0
    %479 = vmatpush2.bf16.msra.mxu0 0
    %480 = vmatprep.subr.bf16.mxu0 0
    %481 = vmatpush2.bf16.msra.mxu0 0
    %482 = vmatprep.subr.bf16.mxu0 0
    %483 = vmatpush2.bf16.msra.mxu0 0
    %484 = vmatprep.subr.bf16.mxu0 0
    %485 = vmatpush2.bf16.msra.mxu0 0
    %486 = vmatprep.subr.bf16.mxu0 0
    %487 = vmatpush2.bf16.msra.mxu0 0
    %488 = vmatprep.subr.bf16.mxu0 0
    %489 = vmatpush2.bf16.msra.mxu0 0
    %490 = vmatprep.mubr.bf16.mxu0 0
    %491 = vmatmul.mubr.bf16.gmra.mxu0 %v381
    %v492 = vpop.f32.mrf.mxu0
    %v493 = vadd.f32 %v409, %v492
    %v494 = vpop.f32.mrf.mxu0
    %v495 = vpop.f32.mrf.mxu0
    %v496 = vadd.f32 %v409, %v495
    %v497 = vpop.f32.mrf.mxu0
    %498 = vmatprep.mubr.bf16.mxu0 0
    %499 = vmatmul.mubr.bf16.gmra.mxu0 %v382
    %v500 = vpop.f32.mrf.mxu0
    %v501 = vadd.f32 %v409, %v500
    %v502 = vpop.f32.mrf.mxu0
    %v503 = vpop.f32.mrf.mxu0
    %v504 = vadd.f32 %v409, %v503
    %v505 = vpop.f32.mrf.mxu0
    %506 = vmatprep.mubr.bf16.mxu0 0
    %507 = vmatmul.mubr.bf16.gmra.mxu0 %v383
    %v508 = vpop.f32.mrf.mxu0
    %v509 = vadd.f32 %v409, %v508
    %v510 = vpop.f32.mrf.mxu0
    %v511 = vpop.f32.mrf.mxu0
    %v512 = vadd.f32 %v409, %v511
    %v513 = vpop.f32.mrf.mxu0
    %514 = vmatprep.mubr.bf16.mxu0 0
    %515 = vmatmul.mubr.bf16.gmra.mxu0 %v384
    %v516 = vpop.f32.mrf.mxu0
    %v517 = vadd.f32 %v409, %v516
    %v518 = vpop.f32.mrf.mxu0
    %v519 = vpop.f32.mrf.mxu0
    %v520 = vadd.f32 %v409, %v519
    %v521 = vpop.f32.mrf.mxu0
    %522 = vmatprep.mubr.bf16.mxu0 0
    %523 = vmatmul.mubr.bf16.gmra.mxu0 %v385
    %v524 = vpop.f32.mrf.mxu0
    %v525 = vadd.f32 %v409, %v524
    %v526 = vpop.f32.mrf.mxu0
    %v527 = vpop.f32.mrf.mxu0
    %v528 = vadd.f32 %v409, %v527
    %v529 = vpop.f32.mrf.mxu0
    %530 = vmatprep.mubr.bf16.mxu0 0
    %531 = vmatmul.mubr.bf16.gmra.mxu0 %v386
    %v532 = vpop.f32.mrf.mxu0
    %v533 = vadd.f32 %v409, %v532
    %v534 = vpop.f32.mrf.mxu0
    %v535 = vpop.f32.mrf.mxu0
    %v536 = vadd.f32 %v409, %v535
    %v537 = vpop.f32.mrf.mxu0
    %538 = vmatprep.mubr.bf16.mxu0 0
    %539 = vmatmul.mubr.bf16.gmra.mxu0 %v387
    %v540 = vpop.f32.mrf.mxu0
    %v541 = vadd.f32 %v409, %v540
    %v542 = vpop.f32.mrf.mxu0
    %v543 = vpop.f32.mrf.mxu0
    %v544 = vadd.f32 %v409, %v543
    %v545 = vpop.f32.mrf.mxu0
    %546 = vmatprep.mubr.bf16.mxu0 0
    %547 = vmatmul.mubr.bf16.gmra.mxu0 %v388
    %v548 = vpop.f32.mrf.mxu0
    %v549 = vadd.f32 %v409, %v548
    %v550 = vpop.f32.mrf.mxu0
    %v551 = vpop.f32.mrf.mxu0
    %v552 = vadd.f32 %v409, %v551
    %v553 = vpop.f32.mrf.mxu0
    %554 = vdwg.mxu0
    %v555 = vxor.u32 %v493, 2147483648
    %v556 = vxor.u32 %v496, 2147483648
    %v557 = vxor.u32 %v501, 2147483648
    %v558 = vxor.u32 %v504, 2147483648
    %v559 = vxor.u32 %v509, 2147483648
    %v560 = vxor.u32 %v512, 2147483648
    %v561 = vxor.u32 %v517, 2147483648
    %v562 = vxor.u32 %v520, 2147483648
    %v563 = vxor.u32 %v525, 2147483648
    %v564 = vxor.u32 %v528, 2147483648
    %v565 = vxor.u32 %v533, 2147483648
    %v566 = vxor.u32 %v536, 2147483648
    %v567 = vxor.u32 %v541, 2147483648
    %v568 = vxor.u32 %v544, 2147483648
    %v569 = vxor.u32 %v549, 2147483648
    %v570 = vxor.u32 %v552, 2147483648
    %v571 = vmul.f32 %v555, 1.442695
    %v572 = vpow.pop %v571
    %v573 = vmul.f32 %v556, 1.442695
    %v574 = vpow.pop %v573
    %v575 = vmul.f32 %v557, 1.442695
    %v576 = vpow.pop %v575
    %v577 = vmul.f32 %v558, 1.442695
    %v578 = vpow.pop %v577
    %v579 = vmul.f32 %v559, 1.442695
    %v580 = vpow.pop %v579
    %v581 = vmul.f32 %v560, 1.442695
    %v582 = vpow.pop %v581
    %v583 = vmul.f32 %v561, 1.442695
    %v584 = vpow.pop %v583
    %v585 = vmul.f32 %v562, 1.442695
    %v586 = vpow.pop %v585
    %v587 = vmul.f32 %v563, 1.442695
    %v588 = vpow.pop %v587
    %v589 = vmul.f32 %v564, 1.442695
    %v590 = vpow.pop %v589
    %v591 = vmul.f32 %v565, 1.442695
    %v592 = vpow.pop %v591
    %v593 = vmul.f32 %v566, 1.442695
    %v594 = vpow.pop %v593
    %v595 = vmul.f32 %v567, 1.442695
    %v596 = vpow.pop %v595
    %v597 = vmul.f32 %v568, 1.442695
    %v598 = vpow.pop %v597
    %v599 = vmul.f32 %v569, 1.442695
    %v600 = vpow.pop %v599
    %v601 = vmul.f32 %v570, 1.442695
    %v602 = vpow.pop %v601
    %v603 = vadd.f32 %v572, 1.0
    %v604 = vadd.f32 %v574, 1.0
    %v605 = vadd.f32 %v576, 1.0
    %v606 = vadd.f32 %v578, 1.0
    %v607 = vadd.f32 %v580, 1.0
    %v608 = vadd.f32 %v582, 1.0
    %v609 = vadd.f32 %v584, 1.0
    %v610 = vadd.f32 %v586, 1.0
    %v611 = vadd.f32 %v588, 1.0
    %v612 = vadd.f32 %v590, 1.0
    %v613 = vadd.f32 %v592, 1.0
    %v614 = vadd.f32 %v594, 1.0
    %v615 = vadd.f32 %v596, 1.0
    %v616 = vadd.f32 %v598, 1.0
    %v617 = vadd.f32 %v600, 1.0
    %v618 = vadd.f32 %v602, 1.0
    %v619 = vrcp.pop %v603
    %v620 = vmul.f32 1.0, %v619
    %v621 = vrcp.pop %v604
    %v622 = vmul.f32 1.0, %v621
    %v623 = vrcp.pop %v605
    %v624 = vmul.f32 1.0, %v623
    %v625 = vrcp.pop %v606
    %v626 = vmul.f32 1.0, %v625
    %v627 = vrcp.pop %v607
    %v628 = vmul.f32 1.0, %v627
    %v629 = vrcp.pop %v608
    %v630 = vmul.f32 1.0, %v629
    %v631 = vrcp.pop %v609
    %v632 = vmul.f32 1.0, %v631
    %v633 = vrcp.pop %v610
    %v634 = vmul.f32 1.0, %v633
    %v635 = vrcp.pop %v611
    %v636 = vmul.f32 1.0, %v635
    %v637 = vrcp.pop %v612
    %v638 = vmul.f32 1.0, %v637
    %v639 = vrcp.pop %v613
    %v640 = vmul.f32 1.0, %v639
    %v641 = vrcp.pop %v614
    %v642 = vmul.f32 1.0, %v641
    %v643 = vrcp.pop %v615
    %v644 = vmul.f32 1.0, %v643
    %v645 = vrcp.pop %v616
    %v646 = vmul.f32 1.0, %v645
    %v647 = vrcp.pop %v617
    %v648 = vmul.f32 1.0, %v647
    %v649 = vrcp.pop %v618
    %v650 = vmul.f32 1.0, %v649
    %v651 = vpack.c.bf16 %v622, %v620
    %v652 = vpack.c.bf16 %v626, %v624
    %v653 = vpack.c.bf16 %v630, %v628
    %v654 = vpack.c.bf16 %v634, %v632
    %v655 = vpack.c.bf16 %v638, %v636
    %v656 = vpack.c.bf16 %v642, %v640
    %v657 = vpack.c.bf16 %v646, %v644
    %v658 = vpack.c.bf16 %v650, %v648
    %s659 = scalar_lea.vmem [#allocation5], 128
    %v660 = vld [vmem:[%s659] sm:$0xf]
    %v661 = vld [vmem:[%s659 + $0x4] sm:$0xf]
    %v662 = vld [vmem:[%s659 + $0x8] sm:$0xf]
    %v663 = vld [vmem:[%s659 + $0xc] sm:$0xf]
    %v664 = vld [vmem:[%s659 + $0x10] sm:$0xf]
    %v665 = vld [vmem:[%s659 + $0x14] sm:$0xf]
    %v666 = vld [vmem:[%s659 + $0x18] sm:$0xf]
    %v667 = vld [vmem:[%s659 + $0x1c] sm:$0xf]
    %v668 = vld [vmem:[%s659 + $0x20] sm:$0xf]
    %v669 = vld [vmem:[%s659 + $0x24] sm:$0xf]
    %v670 = vld [vmem:[%s659 + $0x28] sm:$0xf]
    %v671 = vld [vmem:[%s659 + $0x2c] sm:$0xf]
    %v672 = vld [vmem:[%s659 + $0x30] sm:$0xf]
    %v673 = vld [vmem:[%s659 + $0x34] sm:$0xf]
    %v674 = vld [vmem:[%s659 + $0x38] sm:$0xf]
    %v675 = vld [vmem:[%s659 + $0x3c] sm:$0xf]
    %v676 = vlaneseq
    %v677 = vshrl.u32 %v676, 7
    %v678 = vsub.s32 2, %v677
    %v679 = vrot.slane %v55, %v678
    %v696 = vunpack.c.l.b16 %v660
    %v697 = vunpack.c.l.b16 %v661
    %v698 = vunpack.c.l.b16 %v662
    %v699 = vunpack.c.l.b16 %v663
    %v700 = vunpack.c.l.b16 %v664
    %v701 = vunpack.c.l.b16 %v665
    %v702 = vunpack.c.l.b16 %v666
    %v703 = vunpack.c.l.b16 %v667
    %v704 = vunpack.c.l.b16 %v668
    %v705 = vunpack.c.l.b16 %v669
    %v706 = vunpack.c.l.b16 %v670
    %v707 = vunpack.c.l.b16 %v671
    %v708 = vunpack.c.l.b16 %v672
    %v709 = vunpack.c.l.b16 %v673
    %v710 = vunpack.c.l.b16 %v674
    %v711 = vunpack.c.l.b16 %v675
    %v712 = vpack.c.b16 %v697, %v696
    %v713 = vpack.c.b16 %v699, %v698
    %v714 = vpack.c.b16 %v701, %v700
    %v715 = vpack.c.b16 %v703, %v702
    %v716 = vpack.c.b16 %v705, %v704
    %v717 = vpack.c.b16 %v707, %v706
    %v718 = vpack.c.b16 %v709, %v708
    %v719 = vpack.c.b16 %v711, %v710
    %728 = vmatprep.subr.bf16.mxu0 0
    %729 = vmatpush1.bf16.msra.mxu0 %v719
    %730 = vmatprep.subr.bf16.mxu0 0
    %731 = vmatpush1.bf16.msra.mxu0 %v718
    %732 = vmatprep.subr.bf16.mxu0 0
    %733 = vmatpush1.bf16.msra.mxu0 %v717
    %734 = vmatprep.subr.bf16.mxu0 0
    %735 = vmatpush1.bf16.msra.mxu0 %v716
    %736 = vmatprep.subr.bf16.mxu0 0
    %737 = vmatpush1.bf16.msra.mxu0 %v715
    %738 = vmatprep.subr.bf16.mxu0 0
    %739 = vmatpush1.bf16.msra.mxu0 %v714
    %740 = vmatprep.subr.bf16.mxu0 0
    %741 = vmatpush1.bf16.msra.mxu0 %v713
    %742 = vmatprep.subr.bf16.mxu0 0
    %743 = vmatpush1.bf16.msra.mxu0 %v712
    %744 = vmatprep.subr.bf16.mxu0 0
    %745 = vmatpush2.bf16.msra.mxu0 0
    %746 = vmatprep.subr.bf16.mxu0 0
    %747 = vmatpush2.bf16.msra.mxu0 0
    %748 = vmatprep.subr.bf16.mxu0 0
    %749 = vmatpush2.bf16.msra.mxu0 0
    %750 = vmatprep.subr.bf16.mxu0 0
    %751 = vmatpush2.bf16.msra.mxu0 0
    %752 = vmatprep.subr.bf16.mxu0 0
    %753 = vmatpush2.bf16.msra.mxu0 0
    %754 = vmatprep.subr.bf16.mxu0 0
    %755 = vmatpush2.bf16.msra.mxu0 0
    %756 = vmatprep.subr.bf16.mxu0 0
    %757 = vmatpush2.bf16.msra.mxu0 0
    %758 = vmatprep.subr.bf16.mxu0 0
    %759 = vmatpush2.bf16.msra.mxu0 0
    %760 = vmatprep.mubr.bf16.mxu0 0
    %761 = vmatmul.mubr.bf16.gmra.mxu0 %v651
    %v762 = vpop.f32.mrf.mxu0
    %v763 = vadd.f32 %v679, %v762
    %v764 = vpop.f32.mrf.mxu0
    %v765 = vpop.f32.mrf.mxu0
    %v766 = vadd.f32 %v679, %v765
    %v767 = vpop.f32.mrf.mxu0
    %768 = vmatprep.mubr.bf16.mxu0 0
    %769 = vmatmul.mubr.bf16.gmra.mxu0 %v652
    %v770 = vpop.f32.mrf.mxu0
    %v771 = vadd.f32 %v679, %v770
    %v772 = vpop.f32.mrf.mxu0
    %v773 = vpop.f32.mrf.mxu0
    %v774 = vadd.f32 %v679, %v773
    %v775 = vpop.f32.mrf.mxu0
    %776 = vmatprep.mubr.bf16.mxu0 0
    %777 = vmatmul.mubr.bf16.gmra.mxu0 %v653
    %v778 = vpop.f32.mrf.mxu0
    %v779 = vadd.f32 %v679, %v778
    %v780 = vpop.f32.mrf.mxu0
    %v781 = vpop.f32.mrf.mxu0
    %v782 = vadd.f32 %v679, %v781
    %v783 = vpop.f32.mrf.mxu0
    %784 = vmatprep.mubr.bf16.mxu0 0
    %785 = vmatmul.mubr.bf16.gmra.mxu0 %v654
    %v786 = vpop.f32.mrf.mxu0
    %v787 = vadd.f32 %v679, %v786
    %v788 = vpop.f32.mrf.mxu0
    %v789 = vpop.f32.mrf.mxu0
    %v790 = vadd.f32 %v679, %v789
    %v791 = vpop.f32.mrf.mxu0
    %792 = vmatprep.mubr.bf16.mxu0 0
    %793 = vmatmul.mubr.bf16.gmra.mxu0 %v655
    %v794 = vpop.f32.mrf.mxu0
    %v795 = vadd.f32 %v679, %v794
    %v796 = vpop.f32.mrf.mxu0
    %v797 = vpop.f32.mrf.mxu0
    %v798 = vadd.f32 %v679, %v797
    %v799 = vpop.f32.mrf.mxu0
    %800 = vmatprep.mubr.bf16.mxu0 0
    %801 = vmatmul.mubr.bf16.gmra.mxu0 %v656
    %v802 = vpop.f32.mrf.mxu0
    %v803 = vadd.f32 %v679, %v802
    %v804 = vpop.f32.mrf.mxu0
    %v805 = vpop.f32.mrf.mxu0
    %v806 = vadd.f32 %v679, %v805
    %v807 = vpop.f32.mrf.mxu0
    %808 = vmatprep.mubr.bf16.mxu0 0
    %809 = vmatmul.mubr.bf16.gmra.mxu0 %v657
    %v810 = vpop.f32.mrf.mxu0
    %v811 = vadd.f32 %v679, %v810
    %v812 = vpop.f32.mrf.mxu0
    %v813 = vpop.f32.mrf.mxu0
    %v814 = vadd.f32 %v679, %v813
    %v815 = vpop.f32.mrf.mxu0
    %816 = vmatprep.mubr.bf16.mxu0 0
    %817 = vmatmul.mubr.bf16.gmra.mxu0 %v658
    %v818 = vpop.f32.mrf.mxu0
    %v819 = vadd.f32 %v679, %v818
    %v820 = vpop.f32.mrf.mxu0
    %v821 = vpop.f32.mrf.mxu0
    %v822 = vadd.f32 %v679, %v821
    %v823 = vpop.f32.mrf.mxu0
    %824 = vdwg.mxu0
    %v825 = vxor.u32 %v763, 2147483648
    %v826 = vxor.u32 %v766, 2147483648
    %v827 = vxor.u32 %v771, 2147483648
    %v828 = vxor.u32 %v774, 2147483648
    %v829 = vxor.u32 %v779, 2147483648
    %v830 = vxor.u32 %v782, 2147483648
    %v831 = vxor.u32 %v787, 2147483648
    %v832 = vxor.u32 %v790, 2147483648
    %v833 = vxor.u32 %v795, 2147483648
    %v834 = vxor.u32 %v798, 2147483648
    %v835 = vxor.u32 %v803, 2147483648
    %v836 = vxor.u32 %v806, 2147483648
    %v837 = vxor.u32 %v811, 2147483648
    %v838 = vxor.u32 %v814, 2147483648
    %v839 = vxor.u32 %v819, 2147483648
    %v840 = vxor.u32 %v822, 2147483648
    %v841 = vmul.f32 %v825, 1.442695
    %v842 = vpow.pop %v841
    %v843 = vmul.f32 %v826, 1.442695
    %v844 = vpow.pop %v843
    %v845 = vmul.f32 %v827, 1.442695
    %v846 = vpow.pop %v845
    %v847 = vmul.f32 %v828, 1.442695
    %v848 = vpow.pop %v847
    %v849 = vmul.f32 %v829, 1.442695
    %v850 = vpow.pop %v849
    %v851 = vmul.f32 %v830, 1.442695
    %v852 = vpow.pop %v851
    %v853 = vmul.f32 %v831, 1.442695
    %v854 = vpow.pop %v853
    %v855 = vmul.f32 %v832, 1.442695
    %v856 = vpow.pop %v855
    %v857 = vmul.f32 %v833, 1.442695
    %v858 = vpow.pop %v857
    %v859 = vmul.f32 %v834, 1.442695
    %v860 = vpow.pop %v859
    %v861 = vmul.f32 %v835, 1.442695
    %v862 = vpow.pop %v861
    %v863 = vmul.f32 %v836, 1.442695
    %v864 = vpow.pop %v863
    %v865 = vmul.f32 %v837, 1.442695
    %v866 = vpow.pop %v865
    %v867 = vmul.f32 %v838, 1.442695
    %v868 = vpow.pop %v867
    %v869 = vmul.f32 %v839, 1.442695
    %v870 = vpow.pop %v869
    %v871 = vmul.f32 %v840, 1.442695
    %v872 = vpow.pop %v871
    %v873 = vadd.f32 %v842, 1.0
    %v874 = vadd.f32 %v844, 1.0
    %v875 = vadd.f32 %v846, 1.0
    %v876 = vadd.f32 %v848, 1.0
    %v877 = vadd.f32 %v850, 1.0
    %v878 = vadd.f32 %v852, 1.0
    %v879 = vadd.f32 %v854, 1.0
    %v880 = vadd.f32 %v856, 1.0
    %v881 = vadd.f32 %v858, 1.0
    %v882 = vadd.f32 %v860, 1.0
    %v883 = vadd.f32 %v862, 1.0
    %v884 = vadd.f32 %v864, 1.0
    %v885 = vadd.f32 %v866, 1.0
    %v886 = vadd.f32 %v868, 1.0
    %v887 = vadd.f32 %v870, 1.0
    %v888 = vadd.f32 %v872, 1.0
    %v889 = vrcp.pop %v873
    %v890 = vmul.f32 1.0, %v889
    %v891 = vrcp.pop %v874
    %v892 = vmul.f32 1.0, %v891
    %v893 = vrcp.pop %v875
    %v894 = vmul.f32 1.0, %v893
    %v895 = vrcp.pop %v876
    %v896 = vmul.f32 1.0, %v895
    %v897 = vrcp.pop %v877
    %v898 = vmul.f32 1.0, %v897
    %v899 = vrcp.pop %v878
    %v900 = vmul.f32 1.0, %v899
    %v901 = vrcp.pop %v879
    %v902 = vmul.f32 1.0, %v901
    %v903 = vrcp.pop %v880
    %v904 = vmul.f32 1.0, %v903
    %v905 = vrcp.pop %v881
    %v906 = vmul.f32 1.0, %v905
    %v907 = vrcp.pop %v882
    %v908 = vmul.f32 1.0, %v907
    %v909 = vrcp.pop %v883
    %v910 = vmul.f32 1.0, %v909
    %v911 = vrcp.pop %v884
    %v912 = vmul.f32 1.0, %v911
    %v913 = vrcp.pop %v885
    %v914 = vmul.f32 1.0, %v913
    %v915 = vrcp.pop %v886
    %v916 = vmul.f32 1.0, %v915
    %v917 = vrcp.pop %v887
    %v918 = vmul.f32 1.0, %v917
    %v919 = vrcp.pop %v888
    %v920 = vmul.f32 1.0, %v919
    %v921 = vpack.c.bf16 %v892, %v890
    %v922 = vpack.c.bf16 %v896, %v894
    %v923 = vpack.c.bf16 %v900, %v898
    %v924 = vpack.c.bf16 %v904, %v902
    %v925 = vpack.c.bf16 %v908, %v906
    %v926 = vpack.c.bf16 %v912, %v910
    %v927 = vpack.c.bf16 %v916, %v914
    %v928 = vpack.c.bf16 %v920, %v918
    %s929 = scalar_lea.vmem [#allocation5], 192
    %v930 = vld [vmem:[%s929] sm:$0xf]
    %v931 = vld [vmem:[%s929 + $0x4] sm:$0xf]
    %v932 = vld [vmem:[%s929 + $0x8] sm:$0xf]
    %v933 = vld [vmem:[%s929 + $0xc] sm:$0xf]
    %v934 = vld [vmem:[%s929 + $0x10] sm:$0xf]
    %v935 = vld [vmem:[%s929 + $0x14] sm:$0xf]
    %v936 = vld [vmem:[%s929 + $0x18] sm:$0xf]
    %v937 = vld [vmem:[%s929 + $0x1c] sm:$0xf]
    %v938 = vld [vmem:[%s929 + $0x20] sm:$0xf]
    %v939 = vld [vmem:[%s929 + $0x24] sm:$0xf]
    %v940 = vld [vmem:[%s929 + $0x28] sm:$0xf]
    %v941 = vld [vmem:[%s929 + $0x2c] sm:$0xf]
    %v942 = vld [vmem:[%s929 + $0x30] sm:$0xf]
    %v943 = vld [vmem:[%s929 + $0x34] sm:$0xf]
    %v944 = vld [vmem:[%s929 + $0x38] sm:$0xf]
    %v945 = vld [vmem:[%s929 + $0x3c] sm:$0xf]
    %v946 = vlaneseq
    %v947 = vshrl.u32 %v946, 7
    %v948 = vsub.s32 3, %v947
    %v949 = vrot.slane %v55, %v948
    %v966 = vunpack.c.l.b16 %v930
    %v967 = vunpack.c.l.b16 %v931
    %v968 = vunpack.c.l.b16 %v932
    %v969 = vunpack.c.l.b16 %v933
    %v970 = vunpack.c.l.b16 %v934
    %v971 = vunpack.c.l.b16 %v935
    %v972 = vunpack.c.l.b16 %v936
    %v973 = vunpack.c.l.b16 %v937
    %v974 = vunpack.c.l.b16 %v938
    %v975 = vunpack.c.l.b16 %v939
    %v976 = vunpack.c.l.b16 %v940
    %v977 = vunpack.c.l.b16 %v941
    %v978 = vunpack.c.l.b16 %v942
    %v979 = vunpack.c.l.b16 %v943
    %v980 = vunpack.c.l.b16 %v944
    %v981 = vunpack.c.l.b16 %v945
    %v982 = vpack.c.b16 %v967, %v966
    %v983 = vpack.c.b16 %v969, %v968
    %v984 = vpack.c.b16 %v971, %v970
    %v985 = vpack.c.b16 %v973, %v972
    %v986 = vpack.c.b16 %v975, %v974
    %v987 = vpack.c.b16 %v977, %v976
    %v988 = vpack.c.b16 %v979, %v978
    %v989 = vpack.c.b16 %v981, %v980
    %998 = vmatprep.subr.bf16.mxu0 0
    %999 = vmatpush1.bf16.msra.mxu0 %v989
    %1000 = vmatprep.subr.bf16.mxu0 0
    %1001 = vmatpush1.bf16.msra.mxu0 %v988
    %1002 = vmatprep.subr.bf16.mxu0 0
    %1003 = vmatpush1.bf16.msra.mxu0 %v987
    %1004 = vmatprep.subr.bf16.mxu0 0
    %1005 = vmatpush1.bf16.msra.mxu0 %v986
    %1006 = vmatprep.subr.bf16.mxu0 0
    %1007 = vmatpush1.bf16.msra.mxu0 %v985
    %1008 = vmatprep.subr.bf16.mxu0 0
    %1009 = vmatpush1.bf16.msra.mxu0 %v984
    %1010 = vmatprep.subr.bf16.mxu0 0
    %1011 = vmatpush1.bf16.msra.mxu0 %v983
    %1012 = vmatprep.subr.bf16.mxu0 0
    %1013 = vmatpush1.bf16.msra.mxu0 %v982
    %1014 = vmatprep.subr.bf16.mxu0 0
    %1015 = vmatpush2.bf16.msra.mxu0 0
    %1016 = vmatprep.subr.bf16.mxu0 0
    %1017 = vmatpush2.bf16.msra.mxu0 0
    %1018 = vmatprep.subr.bf16.mxu0 0
    %1019 = vmatpush2.bf16.msra.mxu0 0
    %1020 = vmatprep.subr.bf16.mxu0 0
    %1021 = vmatpush2.bf16.msra.mxu0 0
    %1022 = vmatprep.subr.bf16.mxu0 0
    %1023 = vmatpush2.bf16.msra.mxu0 0
    %1024 = vmatprep.subr.bf16.mxu0 0
    %1025 = vmatpush2.bf16.msra.mxu0 0
    %1026 = vmatprep.subr.bf16.mxu0 0
    %1027 = vmatpush2.bf16.msra.mxu0 0
    %1028 = vmatprep.subr.bf16.mxu0 0
    %1029 = vmatpush2.bf16.msra.mxu0 0
    %1030 = vmatprep.mubr.bf16.mxu0 0
    %1031 = vmatmul.mubr.bf16.gmra.mxu0 %v921
    %v1032 = vpop.f32.mrf.mxu0
    %v1033 = vadd.f32 %v949, %v1032
    %v1034 = vpop.f32.mrf.mxu0
    %v1035 = vpop.f32.mrf.mxu0
    %v1036 = vadd.f32 %v949, %v1035
    %v1037 = vpop.f32.mrf.mxu0
    %1038 = vmatprep.mubr.bf16.mxu0 0
    %1039 = vmatmul.mubr.bf16.gmra.mxu0 %v922
    %v1040 = vpop.f32.mrf.mxu0
    %v1041 = vadd.f32 %v949, %v1040
    %v1042 = vpop.f32.mrf.mxu0
    %v1043 = vpop.f32.mrf.mxu0
    %v1044 = vadd.f32 %v949, %v1043
    %v1045 = vpop.f32.mrf.mxu0
    %1046 = vmatprep.mubr.bf16.mxu0 0
    %1047 = vmatmul.mubr.bf16.gmra.mxu0 %v923
    %v1048 = vpop.f32.mrf.mxu0
    %v1049 = vadd.f32 %v949, %v1048
    %v1050 = vpop.f32.mrf.mxu0
    %v1051 = vpop.f32.mrf.mxu0
    %v1052 = vadd.f32 %v949, %v1051
    %v1053 = vpop.f32.mrf.mxu0
    %1054 = vmatprep.mubr.bf16.mxu0 0
    %1055 = vmatmul.mubr.bf16.gmra.mxu0 %v924
    %v1056 = vpop.f32.mrf.mxu0
    %v1057 = vadd.f32 %v949, %v1056
    %v1058 = vpop.f32.mrf.mxu0
    %v1059 = vpop.f32.mrf.mxu0
    %v1060 = vadd.f32 %v949, %v1059
    %v1061 = vpop.f32.mrf.mxu0
    %1062 = vmatprep.mubr.bf16.mxu0 0
    %1063 = vmatmul.mubr.bf16.gmra.mxu0 %v925
    %v1064 = vpop.f32.mrf.mxu0
    %v1065 = vadd.f32 %v949, %v1064
    %v1066 = vpop.f32.mrf.mxu0
    %v1067 = vpop.f32.mrf.mxu0
    %v1068 = vadd.f32 %v949, %v1067
    %v1069 = vpop.f32.mrf.mxu0
    %1070 = vmatprep.mubr.bf16.mxu0 0
    %1071 = vmatmul.mubr.bf16.gmra.mxu0 %v926
    %v1072 = vpop.f32.mrf.mxu0
    %v1073 = vadd.f32 %v949, %v1072
    %v1074 = vpop.f32.mrf.mxu0
    %v1075 = vpop.f32.mrf.mxu0
    %v1076 = vadd.f32 %v949, %v1075
    %v1077 = vpop.f32.mrf.mxu0
    %1078 = vmatprep.mubr.bf16.mxu0 0
    %1079 = vmatmul.mubr.bf16.gmra.mxu0 %v927
    %v1080 = vpop.f32.mrf.mxu0
    %v1081 = vadd.f32 %v949, %v1080
    %v1082 = vpop.f32.mrf.mxu0
    %v1083 = vpop.f32.mrf.mxu0
    %v1084 = vadd.f32 %v949, %v1083
    %v1085 = vpop.f32.mrf.mxu0
    %1086 = vmatprep.mubr.bf16.mxu0 0
    %1087 = vmatmul.mubr.bf16.gmra.mxu0 %v928
    %v1088 = vpop.f32.mrf.mxu0
    %v1089 = vadd.f32 %v949, %v1088
    %v1090 = vpop.f32.mrf.mxu0
    %v1091 = vpop.f32.mrf.mxu0
    %v1092 = vadd.f32 %v949, %v1091
    %v1093 = vpop.f32.mrf.mxu0
    %1094 = vdwg.mxu0
    %v1095 = vtanh.pop %v1033
    %v1096 = vtanh.pop %v1036
    %v1097 = vtanh.pop %v1041
    %v1098 = vtanh.pop %v1044
    %v1099 = vtanh.pop %v1049
    %v1100 = vtanh.pop %v1052
    %v1101 = vtanh.pop %v1057
    %v1102 = vtanh.pop %v1060
    %v1103 = vtanh.pop %v1065
    %v1104 = vtanh.pop %v1068
    %v1105 = vtanh.pop %v1073
    %v1106 = vtanh.pop %v1076
    %v1107 = vtanh.pop %v1081
    %v1108 = vtanh.pop %v1084
    %v1109 = vtanh.pop %v1089
    %v1110 = vtanh.pop %v1092
    %1111 = vst [vmem:[#allocation8] sm:$0xff] %v1095
    %1112 = vst [vmem:[#allocation8 + $0x8] sm:$0xff] %v1096
    %1113 = vst [vmem:[#allocation8 + $0x10] sm:$0xff] %v1097
    %1114 = vst [vmem:[#allocation8 + $0x18] sm:$0xff] %v1098
    %1115 = vst [vmem:[#allocation8 + $0x20] sm:$0xff] %v1099
    %1116 = vst [vmem:[#allocation8 + $0x28] sm:$0xff] %v1100
    %1117 = vst [vmem:[#allocation8 + $0x30] sm:$0xff] %v1101
    %1118 = vst [vmem:[#allocation8 + $0x38] sm:$0xff] %v1102
    %1119 = vst [vmem:[#allocation8 + $0x40] sm:$0xff] %v1103
    %1120 = vst [vmem:[#allocation8 + $0x48] sm:$0xff] %v1104
    %1121 = vst [vmem:[#allocation8 + $0x50] sm:$0xff] %v1105
    %1122 = vst [vmem:[#allocation8 + $0x58] sm:$0xff] %v1106
    %1123 = vst [vmem:[#allocation8 + $0x60] sm:$0xff] %v1107
    %1124 = vst [vmem:[#allocation8 + $0x68] sm:$0xff] %v1108
    %1125 = vst [vmem:[#allocation8 + $0x70] sm:$0xff] %v1109
    %1126 = vst [vmem:[#allocation8 + $0x78] sm:$0xff] %v1110
    // Predicated region
    $region26: #{tpu_custom_call.1} parent=1 // pred_check
      _
    $region27: #{tpu_custom_call.1} parent=1 // pred_check_branch
      %1128 = sbr.rel (0) target = $region29
    $region28: #{tpu_custom_call.1} parent=1 // pred_region
      %s1130 = ssub.s32 2048, 2048
      %1131 = vsyncadd [#allocation4], %s1130
      %s1132 = sshll.u32 [#allocation8], 4
      %s1133 = int_to_ptr.vmem [resolvable:$true] %s1132
      %1138 = dma.vmem_to_hbm [thread:$0]  %s1133, 2048, %s3, [#allocation4], 128, 128, 8
    $region29: #{tpu_custom_call.1} parent=1 // pred_fallthru
      _
    // Predicated region
    $region30: #{tpu_custom_call.1} parent=1 // pred_check
      _
    $region31: #{tpu_custom_call.1} parent=1 // pred_check_branch
      %1140 = sbr.rel (0) target = $region33
    $region32: #{tpu_custom_call.1} parent=1 // pred_region
      %1141 = dma.done [#allocation4], 2048
    $region33: #{tpu_custom_call.1} parent=1 // pred_fallthru
      _
    %1142 = vsyncpa [#allocation3], 1
    %1143 = vsyncpa [#allocation6], 1
    %1144 = vsyncpa [#allocation4], 1

</llo_original>
